<compile_context>
chip_gen: v5e
topology: v5e:2x2
jax: 0.10.0
libtpu: 0.0.40
codegen_flags: <defaults>
</compile_context>

<pallas_src>
import jax
import jax.numpy as jnp
from jax.experimental import pallas as pl
from jax.experimental.pallas import tpu as pltpu


# ----------------------------------------------------------------------------
# Kernels
# ----------------------------------------------------------------------------
def _make_se_kernel(inv_hw):
    """Fused squeeze + excitation-MLP + rescale. inv_hw = 1 / (true H*W)."""

    def se_kernel(x_ref, w1_ref, b1_ref, w2_ref, b2_ref, o_ref):
        # x_ref: (Bt, C, HW) slab for the current batch tile.
        x = x_ref[...]

        # ---- squeeze: spatial sum with f32 accumulation, scaled by 1/HW ----
        # (any zero lane-padding does not change the sum; inv_hw uses true HW)
        m = jnp.sum(x, axis=-1, dtype=jnp.float32) * inv_hw            # (Bt, C)

        # ---- excitation MLP, batched over Bt rows (tiny; hides under DMA) ----
        h = jnp.dot(m, w1_ref[...],
                    preferred_element_type=jnp.float32) + b1_ref[...]  # (Bt, Cr)
        h = jnp.maximum(h, 0.0)
        g = jnp.dot(h, w2_ref[...],
                    preferred_element_type=jnp.float32) + b2_ref[...]  # (Bt, C)
        g = jnp.maximum(g, 0.0)        # ReLU after linear2: matches the module
        s = jax.nn.sigmoid(g)                                          # (Bt, C)

        # ---- per-channel rescale (input dtype: no f32 slab for bf16 inputs) --
        scale = s.astype(x.dtype)[:, :, None]                          # (Bt, C, 1)
        o_ref[...] = (x * scale).astype(o_ref.dtype)

    return se_kernel


def _squeeze_kernel(x_ref, o_ref):
    # x_ref: (1, Ct, HW) -> o_ref: (1, Ct, 1) f32 spatial sum.
    o_ref[...] = jnp.sum(x_ref[...], axis=-1, keepdims=True, dtype=jnp.float32)


def _rescale_kernel(x_ref, s_ref, o_ref):
    # x_ref: (1, Ct, HW); s_ref: (1, Ct, 1) f32 gate.
    x = x_ref[...]
    o_ref[...] = (x * s_ref[...].astype(x.dtype)).astype(o_ref.dtype)


# ----------------------------------------------------------------------------
# Sizing helpers (generation-aware)
# ----------------------------------------------------------------------------
def _vmem_ceiling_bytes():
    """Ceiling for vmem_limit_bytes derived from physical VMEM capacity."""
    cap = 64 << 20          # conservative default = v7x per-core VMEM
    try:
        info = pltpu.get_tpu_info()
        cap = int(getattr(info, "vmem_capacity_bytes", cap)) or cap
    except Exception:
        pass
    # ~96 MiB on 128-MiB parts (v5e/v6e), ~48 MiB on 64-MiB parts (v7x).
    return max(min((cap * 3) // 4, cap - (16 << 20)), 16 << 20)


def _choose_batch_tile(B, per_elem_bytes, budget_bytes, min_steps=4):
    """Largest divisor Bt of B with Bt*per_elem <= budget. Prefer >= min_steps
    grid steps (>= 2 per TensorCore) as long as blocks stay >= 1 MiB.
    Returns None when even a single batch element exceeds the budget."""
    fitting = [d for d in range(1, B + 1)
               if B % d == 0 and d * per_elem_bytes <= budget_bytes]
    if not fitting:
        return None
    preferred = [d for d in fitting
                 if B // d >= min_steps and d * per_elem_bytes >= (1 << 20)]
    if preferred:
        return max(preferred)
    preferred = [d for d in fitting if B // d >= 2]
    if preferred:
        return max(preferred)
    return max(fitting)


# ----------------------------------------------------------------------------
# Two-pass fallback (when one batch element exceeds the block budget)
# ----------------------------------------------------------------------------
def _se_block_two_pass(x, w1, b1, w2, b2, inv_hw, block_budget, vmem_ceiling,
                       param_bytes):
    """3-HBM-pass escape hatch: Pallas squeeze (read x) -> tiny JAX MLP on
    (B, C) -> Pallas rescale (read x, write out). C is tiled freely here since
    channel mixing only happens in the MLP."""
    B, C, HW = x.shape
    itemsize = jnp.dtype(x.dtype).itemsize

    ct_cands = [d for d in range(1, C + 1)
                if C % d == 0 and (d % 8 == 0 or d == C)
                and d * HW * itemsize <= block_budget]
    if not ct_cands:
        raise ValueError(
            "SEBlock pallas kernel: a single channel tile "
            f"(>= {8 * HW * itemsize} bytes) does not fit the per-block VMEM "
            f"budget ({block_budget} bytes); input too large for this kernel.")
    Ct = max(ct_cands)
    grid = (B, C // Ct)

    block_bytes = Ct * HW * itemsize
    vmem_limit = int(min(max(4 * block_bytes + param_bytes + (2 << 20), 8 << 20),
                         vmem_ceiling))
    cparams = pltpu.CompilerParams(
        dimension_semantics=("parallel", "parallel"),
        vmem_limit_bytes=vmem_limit,
    )

    sums = pl.pallas_call(
        _squeeze_kernel,
        out_shape=jax.ShapeDtypeStruct((B, C, 1), jnp.float32),
        grid_spec=pltpu.PrefetchScalarGridSpec(
            num_scalar_prefetch=0,
            grid=grid,
            in_specs=[pl.BlockSpec((1, Ct, HW), lambda b, c: (b, c, 0))],
            out_specs=pl.BlockSpec((1, Ct, 1), lambda b, c: (b, c, 0)),
        ),
        compiler_params=cparams,
    )(x)

    # Tiny excitation MLP on (B, C): negligible, leave to XLA.
    m = sums[:, :, 0] * inv_hw
    h = jnp.maximum(m @ w1 + b1, 0.0)
    g = jnp.maximum(h @ w2 + b2, 0.0)
    s = jax.nn.sigmoid(g).astype(jnp.float32)[:, :, None]           # (B, C, 1)

    return pl.pallas_call(
        _rescale_kernel,
        out_shape=jax.ShapeDtypeStruct((B, C, HW), x.dtype),
        grid_spec=pltpu.PrefetchScalarGridSpec(
            num_scalar_prefetch=0,
            grid=grid,
            in_specs=[pl.BlockSpec((1, Ct, HW), lambda b, c: (b, c, 0)),
                      pl.BlockSpec((1, Ct, 1), lambda b, c: (b, c, 0))],
            out_specs=pl.BlockSpec((1, Ct, HW), lambda b, c: (b, c, 0)),
        ),
        compiler_params=cparams,
    )(x, s)


# ----------------------------------------------------------------------------
# Public wrapper
# ----------------------------------------------------------------------------
def se_block_pallas(x_nchw, w1, b1, w2, b2, *, force_two_pass=False):
    """x_nchw: (B, C, H, W). w1: (C, Cr), b1: (1, Cr), w2: (Cr, C), b2: (1, C).

    Weights are stored pre-transposed vs torch.nn.Linear (torch weight is
    (out, in); here (in, out)) so the kernel computes activations @ weight."""
    B, C, H, W = x_nchw.shape
    HW = H * W
    Cr = w1.shape[1]
    itemsize = jnp.dtype(x_nchw.dtype).itemsize

    x = x_nchw.reshape(B, C, HW)

    # No pad/slice HBM round-trips in the common case: a block last dim equal
    # to the full HW is legal even when HW % 128 != 0 (masked vst only on the
    # final lane group). Pad only the degenerate HW < 128 case.
    pad = 128 - HW if HW < 128 else 0
    if pad:
        x = jnp.pad(x, ((0, 0), (0, 0), (0, pad)))
    HW_k = HW + pad
    inv_hw = 1.0 / float(HW)     # mean always divides by the TRUE H*W

    param_bytes = sum(int(a.size) * jnp.dtype(a.dtype).itemsize
                      for a in (w1, b1, w2, b2))

    # Generation-aware sizing: keep 4 * block + params under ~75% of the
    # requested scoped-VMEM limit, which itself is ~3/4 of physical VMEM.
    vmem_ceiling = _vmem_ceiling_bytes()
    usable = (vmem_ceiling * 3) // 4
    block_budget = max((usable - 2 * param_bytes - (1 << 20)) // 4, 1 << 20)

    per_elem_bytes = C * HW_k * itemsize
    Bt = None if force_two_pass else _choose_batch_tile(B, per_elem_bytes,
                                                        block_budget)

    if Bt is None:
        out = _se_block_two_pass(x, w1, b1, w2, b2, inv_hw, block_budget,
                                 vmem_ceiling, param_bytes)
    else:
        grid = (B // Bt,)
        block_bytes = Bt * per_elem_bytes
        vmem_limit = int(min(max(4 * block_bytes + 2 * param_bytes + (2 << 20),
                                 8 << 20),
                             vmem_ceiling))

        cost = pl.CostEstimate(
            flops=int(2 * B * C * HW_k + 4 * B * C * Cr),
            transcendentals=int(B * C),
            bytes_accessed=int(2 * B * C * HW_k * itemsize + param_bytes),
        )

        # TODO(synk): on v7x with blocks <= ~4 MiB, sweep
        # pipeline_mode=pl.Buffered(3) on the x spec (short DMAs at 3.2 TB/s).
        out = pl.pallas_call(
            _make_se_kernel(inv_hw),
            out_shape=jax.ShapeDtypeStruct((B, C, HW_k), x_nchw.dtype),
            grid_spec=pltpu.PrefetchScalarGridSpec(
                num_scalar_prefetch=0,
                grid=grid,
                in_specs=[
                    pl.BlockSpec((Bt, C, HW_k), lambda b: (b, 0, 0)),  # x slab
                    pl.BlockSpec((C, Cr), lambda b: (0, 0)),           # w1 (resident)
                    pl.BlockSpec((1, Cr), lambda b: (0, 0)),           # b1
                    pl.BlockSpec((Cr, C), lambda b: (0, 0)),           # w2
                    pl.BlockSpec((1, C), lambda b: (0, 0)),            # b2
                ],
                out_specs=pl.BlockSpec((Bt, C, HW_k), lambda b: (b, 0, 0)),
            ),
            compiler_params=pltpu.CompilerParams(
                dimension_semantics=("parallel",),
                vmem_limit_bytes=vmem_limit,
            ),
            cost_estimate=cost,
        )(x, w1, b1, w2, b2)

    if pad:
        out = out[:, :, :HW]
    return out.reshape(B, C, H, W)


def se_block_reference(x_nchw, w1, b1, w2, b2):
    B, C, H, W = x_nchw.shape
    x = x_nchw.reshape(B, C, -1).astype(jnp.float32)
    m = jnp.mean(x, axis=-1)                                  # (B, C)
    h = jnp.maximum(m @ w1 + b1, 0.0)                         # (B, Cr)
    g = jnp.maximum(h @ w2 + b2, 0.0)                         # (B, C)
    s = jax.nn.sigmoid(g)                                     # (B, C)
    return (x_nchw.astype(jnp.float32) * s[:, :, None, None]).astype(x_nchw.dtype)


if __name__ == "__main__":
    # Small shapes consistent with the module: ch must be divisible by ratio.
    B, C, H, W = 2, 32, 16, 16
    ratio = 16
    Cr = C // ratio  # 2

    key = jax.random.PRNGKey(0)
    k_x, k_w1, k_b1, k_w2, k_b2 = jax.random.split(key, 5)

    x = jax.random.normal(k_x, (B, C, H, W), dtype=jnp.float32)

    # Deterministic synthetic parameters (shapes match nn.Linear(ch, ch//ratio)
    # and nn.Linear(ch//ratio, ch); stored as (in, out) for the kernel).
    w1 = jax.random.normal(k_w1, (C, Cr), dtype=jnp.float32) * (1.0 / jnp.sqrt(C))
    b1 = jax.random.normal(k_b1, (1, Cr), dtype=jnp.float32) * 0.1
    w2 = jax.random.normal(k_w2, (Cr, C), dtype=jnp.float32) * (1.0 / jnp.sqrt(Cr))
    b2 = jax.random.normal(k_b2, (1, C), dtype=jnp.float32) * 0.1

    y_ref = se_block_reference(x, w1, b1, w2, b2)

    # Main fused single-pass path.
    y = jax.block_until_ready(se_block_pallas(x, w1, b1, w2, b2))
    assert jnp.allclose(y, y_ref, atol=1e-5, rtol=1e-5), "fused path mismatch"

    # Two-pass fallback path (exercised explicitly so the escape hatch is tested).
    y2 = jax.block_until_ready(
        se_block_pallas(x, w1, b1, w2, b2, force_two_pass=True))
    assert jnp.allclose(y2, y_ref, atol=1e-5, rtol=1e-5), "two-pass path mismatch"

    print("KERNEL_OK")
</pallas_src>

<mosaic_0001>
module attributes {stable_mosaic.version = 11 : i64} {
  func.func @se_kernel(%arg0: i32, %arg1: memref<1x32x256xf32, #tpu.memory_space<vmem>>, %arg2: memref<32x2xf32, #tpu.memory_space<vmem>>, %arg3: memref<1x2xf32, #tpu.memory_space<vmem>>, %arg4: memref<2x32xf32, #tpu.memory_space<vmem>>, %arg5: memref<1x32xf32, #tpu.memory_space<vmem>>, %arg6: memref<1x32x256xf32, #tpu.memory_space<vmem>>) attributes {dimension_semantics = [#tpu.dimension_semantics<parallel>], iteration_bounds = array<i64: 2>, scalar_prefetch = 0 : i64, scratch_operands = 0 : i64, tpu.core_type = #tpu.core_type<tc>, window_params = [{transform_indices = @transform_0, window_bounds = array<i64: 1, 32, 256>}, {pipeline_mode = #tpu.pipeline_mode<synchronous>, transform_indices = @transform_1, window_bounds = array<i64: 32, 2>}, {pipeline_mode = #tpu.pipeline_mode<synchronous>, transform_indices = @transform_2, window_bounds = array<i64: 1, 2>}, {pipeline_mode = #tpu.pipeline_mode<synchronous>, transform_indices = @transform_3, window_bounds = array<i64: 2, 32>}, {pipeline_mode = #tpu.pipeline_mode<synchronous>, transform_indices = @transform_4, window_bounds = array<i64: 1, 32>}, {transform_indices = @transform_5, window_bounds = array<i64: 1, 32, 256>}]} {
    %c0 = arith.constant 0 : index
    %c0_0 = arith.constant 0 : index
    %c0_1 = arith.constant 0 : index
    %0 = vector.load %arg1[%c0, %c0_0, %c0_1] : memref<1x32x256xf32, #tpu.memory_space<vmem>>, vector<1x32x256xf32>
    %cst = arith.constant dense<0.000000e+00> : vector<1x32xf32>
    %1 = vector.multi_reduction <add>, %0, %cst [2] : vector<1x32x256xf32> to vector<1x32xf32>
    %cst_2 = arith.constant 3.906250e-03 : f32
    %2 = vector.broadcast %cst_2 : f32 to vector<1x32xf32>
    %3 = arith.mulf %1, %2 : vector<1x32xf32>
    %c0_3 = arith.constant 0 : index
    %c0_4 = arith.constant 0 : index
    %4 = vector.load %arg2[%c0_3, %c0_4] : memref<32x2xf32, #tpu.memory_space<vmem>>, vector<32x2xf32>
    %cst_5 = arith.constant dense<0.000000e+00> : vector<1x2xf32>
    %5 = tpu.matmul %3, %4, %cst_5 {dimension_numbers = #tpu.dot_dimension_numbers<[1], [0], [0], [1], [0, 0, 1, 1], [], []>} : vector<1x32xf32>, vector<32x2xf32>, vector<1x2xf32> -> vector<1x2xf32>
    %c0_6 = arith.constant 0 : index
    %c0_7 = arith.constant 0 : index
    %6 = vector.load %arg3[%c0_6, %c0_7] : memref<1x2xf32, #tpu.memory_space<vmem>>, vector<1x2xf32>
    %7 = arith.addf %5, %6 : vector<1x2xf32>
    %cst_8 = arith.constant 0.000000e+00 : f32
    %8 = vector.broadcast %cst_8 : f32 to vector<1x2xf32>
    %9 = arith.maximumf %7, %8 : vector<1x2xf32>
    %c0_9 = arith.constant 0 : index
    %c0_10 = arith.constant 0 : index
    %10 = vector.load %arg4[%c0_9, %c0_10] : memref<2x32xf32, #tpu.memory_space<vmem>>, vector<2x32xf32>
    %cst_11 = arith.constant dense<0.000000e+00> : vector<1x32xf32>
    %11 = tpu.matmul %9, %10, %cst_11 {dimension_numbers = #tpu.dot_dimension_numbers<[1], [0], [0], [1], [0, 0, 1, 1], [], []>} : vector<1x2xf32>, vector<2x32xf32>, vector<1x32xf32> -> vector<1x32xf32>
    %c0_12 = arith.constant 0 : index
    %c0_13 = arith.constant 0 : index
    %12 = vector.load %arg5[%c0_12, %c0_13] : memref<1x32xf32, #tpu.memory_space<vmem>>, vector<1x32xf32>
    %13 = arith.addf %11, %12 : vector<1x32xf32>
    %cst_14 = arith.constant 0.000000e+00 : f32
    %14 = vector.broadcast %cst_14 : f32 to vector<1x32xf32>
    %15 = arith.maximumf %13, %14 : vector<1x32xf32>
    %16 = arith.negf %15 : vector<1x32xf32>
    %17 = math.exp %16 : vector<1x32xf32>
    %cst_15 = arith.constant 1.000000e+00 : f32
    %18 = vector.broadcast %cst_15 : f32 to vector<1x32xf32>
    %19 = arith.addf %18, %17 : vector<1x32xf32>
    %20 = arith.divf %18, %19 : vector<1x32xf32>
    %21 = vector.shape_cast %20 : vector<1x32xf32> to vector<1x32x1xf32>
    %22 = vector.broadcast %21 : vector<1x32x1xf32> to vector<1x32x256xf32>
    %23 = arith.mulf %0, %22 : vector<1x32x256xf32>
    %c0_16 = arith.constant 0 : index
    %c0_17 = arith.constant 0 : index
    %c0_18 = arith.constant 0 : index
    %24 = vector.load %arg6[%c0_16, %c0_17, %c0_18] : memref<1x32x256xf32, #tpu.memory_space<vmem>>, vector<1x32x256xf32>
    tpu.vector_store %arg6[%c0_16, %c0_17, %c0_18], %23 {strides = array<i32>} : memref<1x32x256xf32, #tpu.memory_space<vmem>>, vector<1x32x256xf32>,
    return
  }
  func.func @transform_0(%arg0: i32) -> (i32, i32, i32) {
    %c0_i32 = arith.constant 0 : i32
    %c0_i32_0 = arith.constant 0 : i32
    %c0_i32_1 = arith.constant 0 : i32
    return %arg0, %c0_i32, %c0_i32_0 : i32, i32, i32
  }
  func.func @transform_1(%arg0: i32) -> (i32, i32) {
    %c0_i32 = arith.constant 0 : i32
    %c0_i32_0 = arith.constant 0 : i32
    %c0_i32_1 = arith.constant 0 : i32
    return %c0_i32, %c0_i32_0 : i32, i32
  }
  func.func @transform_2(%arg0: i32) -> (i32, i32) {
    %c0_i32 = arith.constant 0 : i32
    %c0_i32_0 = arith.constant 0 : i32
    %c0_i32_1 = arith.constant 0 : i32
    return %c0_i32, %c0_i32_0 : i32, i32
  }
  func.func @transform_3(%arg0: i32) -> (i32, i32) {
    %c0_i32 = arith.constant 0 : i32
    %c0_i32_0 = arith.constant 0 : i32
    %c0_i32_1 = arith.constant 0 : i32
    return %c0_i32, %c0_i32_0 : i32, i32
  }
  func.func @transform_4(%arg0: i32) -> (i32, i32) {
    %c0_i32 = arith.constant 0 : i32
    %c0_i32_0 = arith.constant 0 : i32
    %c0_i32_1 = arith.constant 0 : i32
    return %c0_i32, %c0_i32_0 : i32, i32
  }
  func.func @transform_5(%arg0: i32) -> (i32, i32, i32) {
    %c0_i32 = arith.constant 0 : i32
    %c0_i32_0 = arith.constant 0 : i32
    %c0_i32_1 = arith.constant 0 : i32
    return %arg0, %c0_i32, %c0_i32_0 : i32, i32, i32
  }
}

</mosaic_0001>

<llo_original>
// kernel: tpu_custom_call.1
$region0: #{tpu_custom_call.1}
  #allocation0 [shape = 'u32[]', space=smem, size = 0x4, offset = 0x4, fixed_abs, tag = 'smem constant byte address 0x4 - core index']
  #allocation1 [shape = 'u32[72,128]{1,0:T(1,128)}', space=vmem, size = 0x9000, scoped, tag = 'internal scratch']
  %s0 = inlined_call_operand.hbm [shape: f32[2,32,256], index: 0, kind: input, shape index: {}]
  %s1 = inlined_call_operand.vmem [shape: f32[32,2], index: 1, kind: input, shape index: {}]
  %s2 = inlined_call_operand.vmem [shape: f32[1,2], index: 2, kind: input, shape index: {}]
  %s3 = inlined_call_operand.vmem [shape: f32[2,32], index: 3, kind: input, shape index: {}]
  %s4 = inlined_call_operand.vmem [shape: f32[1,32], index: 4, kind: input, shape index: {}]
  %s5 = inlined_call_operand.hbm [shape: f32[2,32,256], index: 5, kind: output, shape index: {}]
  %s6 = sld [smem:[#allocation0]]
  $region57: #{tpu_custom_call.1} parent=0
    _
  %s8 = ssub.s32 1, %s6
  %s9 = scalar_select 0, %s8, %s6
  $region1: #{tpu_custom_call.1} parent=0
    #allocation2 [shape = 'u8[65536]{0}', space=vmem, size = 0x10000, scoped, tag = 'input window, operand 0']
    #allocation3 [shape = 's32[2]{0}', space=sflag, size = 0x8, scoped, tag = 'scoped memory for tpu_custom_call.1']
    #allocation4 [shape = 's32[2]{0}', space=sflag, size = 0x8, scoped, tag = 'scoped memory for tpu_custom_call.1']
    #allocation5 [shape = 'u8[65536]{0}', space=vmem, size = 0x10000, scoped, tag = 'output window, operand 0']
    %10 = vsyncpa [#allocation3], 0
    %s11 = scalar_lea.sflag [#allocation3], 1
    %12 = vsyncpa %s11, 0
    %13 = vsyncpa [#allocation4], 0
    %s14 = scalar_lea.sflag [#allocation4], 1
    %15 = vsyncpa %s14, 0
    loop: start=0, step=1, limit=4
    $region2: #{tpu_custom_call.1} parent=1 // loop_pre_header
      _
    $region3: #{tpu_custom_call.1} parent=1 // loop_header
      %s17 = sphi 0, %s21
      %p18 = scmp.ge.s32.totalorder %s17, 4
      %s27 = sphi 0, %s29
      %s30 = sphi 0, %s27
      %s31 = sphi 0, %s30
      %s47 = sphi 0, %s31
      %s51 = sphi 0, %s51
      %s53 = sphi 0, %s51
      %s54 = sphi 0, %s53
      %s68 = sphi 0, %s54
      %s72 = sphi 0, %s72
      %s74 = sphi 0, %s72
      %s75 = sphi 0, %s74
      %s89 = sphi 0, %s75
      %s93 = sphi 0, %s93
      %s95 = sphi 0, %s93
      %s96 = sphi 0, %s95
      %s110 = sphi 0, %s96
      %s114 = sphi 0, %s114
      %s116 = sphi 0, %s114
      %s117 = sphi 0, %s116
      %s131 = sphi 0, %s117
      %s137 = sphi 0, %s139
      %s140 = sphi 0, %s137
      %s141 = sphi 0, %s140
      %s157 = sphi 0, %s141
    $region4: #{tpu_custom_call.1} parent=1 // loop_header_branch
      %20 = sbr.rel (%p18) target = $region8
    $region5: #{tpu_custom_call.1} parent=1 // loop_body
      %s22 = ssub.s32 %s17, 1
      %s23 = ssub.s32 %s17, 2
      %s24 = sadd.s32 %s17, 1
      %s25 = ssub.s32 %s17, %s24
      %p26 = scmp.eq.s32.totalorder %s25, 0
      %s28 = sadd.s32 %s27, 1
      %s29 = scalar_select %p26, %s27, %s28
      %p32 = pneg %p26
      %p33 = scmp.eq.s32.totalorder %s17, 1
      %p34 = por %p32, %p33
      %p35 = scmp.ne.s32.totalorder %s27, %s30
      %p36 = scmp.eq.s32.totalorder %s17, 0
      %p37 = por %p35, %p36
      %p38 = scmp.ne.s32.totalorder %s27, %s30
      %p39 = scmp.eq.s32.totalorder %s22, 1
      %p40 = por %p38, %p39
      %p41 = scmp.ne.s32.totalorder %s30, %s31
      %p42 = scmp.eq.s32.totalorder %s22, 0
      %p43 = por %p41, %p42
      %p44 = scmp.ne.s32.totalorder %s30, %s31
      %p45 = scmp.eq.s32.totalorder %s23, 1
      %p46 = por %p44, %p45
      %p48 = scmp.ne.s32.totalorder %s31, %s47
      %p49 = scmp.eq.s32.totalorder %s23, 0
      %p50 = por %p48, %p49
      %s52 = sadd.s32 %s51, 1
      %p55 = scmp.eq.s32.totalorder %s17, 1
      %p56 = scmp.ne.s32.totalorder %s51, %s53
      %p57 = scmp.eq.s32.totalorder %s17, 0
      %p58 = por %p56, %p57
      %p59 = scmp.ne.s32.totalorder %s51, %s53
      %p60 = scmp.eq.s32.totalorder %s22, 1
      %p61 = por %p59, %p60
      %p62 = scmp.ne.s32.totalorder %s53, %s54
      %p63 = scmp.eq.s32.totalorder %s22, 0
      %p64 = por %p62, %p63
      %p65 = scmp.ne.s32.totalorder %s53, %s54
      %p66 = scmp.eq.s32.totalorder %s23, 1
      %p67 = por %p65, %p66
      %p69 = scmp.ne.s32.totalorder %s54, %s68
      %p70 = scmp.eq.s32.totalorder %s23, 0
      %p71 = por %p69, %p70
      %s73 = sadd.s32 %s72, 1
      %p76 = scmp.eq.s32.totalorder %s17, 1
      %p77 = scmp.ne.s32.totalorder %s72, %s74
      %p78 = scmp.eq.s32.totalorder %s17, 0
      %p79 = por %p77, %p78
      %p80 = scmp.ne.s32.totalorder %s72, %s74
      %p81 = scmp.eq.s32.totalorder %s22, 1
      %p82 = por %p80, %p81
      %p83 = scmp.ne.s32.totalorder %s74, %s75
      %p84 = scmp.eq.s32.totalorder %s22, 0
      %p85 = por %p83, %p84
      %p86 = scmp.ne.s32.totalorder %s74, %s75
      %p87 = scmp.eq.s32.totalorder %s23, 1
      %p88 = por %p86, %p87
      %p90 = scmp.ne.s32.totalorder %s75, %s89
      %p91 = scmp.eq.s32.totalorder %s23, 0
      %p92 = por %p90, %p91
      %s94 = sadd.s32 %s93, 1
      %p97 = scmp.eq.s32.totalorder %s17, 1
      %p98 = scmp.ne.s32.totalorder %s93, %s95
      %p99 = scmp.eq.s32.totalorder %s17, 0
      %p100 = por %p98, %p99
      %p101 = scmp.ne.s32.totalorder %s93, %s95
      %p102 = scmp.eq.s32.totalorder %s22, 1
      %p103 = por %p101, %p102
      %p104 = scmp.ne.s32.totalorder %s95, %s96
      %p105 = scmp.eq.s32.totalorder %s22, 0
      %p106 = por %p104, %p105
      %p107 = scmp.ne.s32.totalorder %s95, %s96
      %p108 = scmp.eq.s32.totalorder %s23, 1
      %p109 = por %p107, %p108
      %p111 = scmp.ne.s32.totalorder %s96, %s110
      %p112 = scmp.eq.s32.totalorder %s23, 0
      %p113 = por %p111, %p112
      %s115 = sadd.s32 %s114, 1
      %p118 = scmp.eq.s32.totalorder %s17, 1
      %p119 = scmp.ne.s32.totalorder %s114, %s116
      %p120 = scmp.eq.s32.totalorder %s17, 0
      %p121 = por %p119, %p120
      %p122 = scmp.ne.s32.totalorder %s114, %s116
      %p123 = scmp.eq.s32.totalorder %s22, 1
      %p124 = por %p122, %p123
      %p125 = scmp.ne.s32.totalorder %s116, %s117
      %p126 = scmp.eq.s32.totalorder %s22, 0
      %p127 = por %p125, %p126
      %p128 = scmp.ne.s32.totalorder %s116, %s117
      %p129 = scmp.eq.s32.totalorder %s23, 1
      %p130 = por %p128, %p129
      %p132 = scmp.ne.s32.totalorder %s117, %s131
      %p133 = scmp.eq.s32.totalorder %s23, 0
      %p134 = por %p132, %p133
      %s135 = ssub.s32 %s17, %s24
      %p136 = scmp.eq.s32.totalorder %s135, 0
      %s138 = sadd.s32 %s137, 1
      %s139 = scalar_select %p136, %s137, %s138
      %p142 = pneg %p136
      %p143 = scmp.eq.s32.totalorder %s17, 1
      %p144 = por %p142, %p143
      %p145 = scmp.ne.s32.totalorder %s137, %s140
      %p146 = scmp.eq.s32.totalorder %s17, 0
      %p147 = por %p145, %p146
      %p148 = scmp.ne.s32.totalorder %s137, %s140
      %p149 = scmp.eq.s32.totalorder %s22, 1
      %p150 = por %p148, %p149
      %p151 = scmp.ne.s32.totalorder %s140, %s141
      %p152 = scmp.eq.s32.totalorder %s22, 0
      %p153 = por %p151, %p152
      %p154 = scmp.ne.s32.totalorder %s140, %s141
      %p155 = scmp.eq.s32.totalorder %s23, 1
      %p156 = por %p154, %p155
      %p158 = scmp.ne.s32.totalorder %s141, %s157
      %p159 = scmp.eq.s32.totalorder %s23, 0
      %p160 = por %p158, %p159
      %p161 = scmp.le.s32.totalorder 1, %s17
      %p162 = scmp.lt.s32.totalorder %s17, 3
      %p163 = pnand %p161, %p162
      %p164 = pneg %p163
      // Predicated region
      $region9: #{tpu_custom_call.1} parent=5 // pred_check
        _
      $region10: #{tpu_custom_call.1} parent=5 // pred_check_branch
        %166 = sbr.rel (%p163) target = $region12
      $region11: #{tpu_custom_call.1} parent=5 // pred_region
        %s167 = ssub.s32 %s17, 1
        // Predicated region
        $region13: #{tpu_custom_call.1} parent=11 // pred_check
          %p168 = pneg %p64
        $region14: #{tpu_custom_call.1} parent=11 // pred_check_branch
          %170 = sbr.rel (%p168) target = $region16
        $region15: #{tpu_custom_call.1} parent=11 // pred_region
          _
        $region16: #{tpu_custom_call.1} parent=11 // pred_fallthru
          _
        // Predicated region
        $region17: #{tpu_custom_call.1} parent=11 // pred_check
          %p171 = pneg %p85
        $region18: #{tpu_custom_call.1} parent=11 // pred_check_branch
          %173 = sbr.rel (%p171) target = $region20
        $region19: #{tpu_custom_call.1} parent=11 // pred_region
          _
        $region20: #{tpu_custom_call.1} parent=11 // pred_fallthru
          _
        // Predicated region
        $region21: #{tpu_custom_call.1} parent=11 // pred_check
          %p174 = pneg %p106
        $region22: #{tpu_custom_call.1} parent=11 // pred_check_branch
          %176 = sbr.rel (%p174) target = $region24
        $region23: #{tpu_custom_call.1} parent=11 // pred_region
          _
        $region24: #{tpu_custom_call.1} parent=11 // pred_fallthru
          _
        // Predicated region
        $region25: #{tpu_custom_call.1} parent=11 // pred_check
          %p177 = pneg %p127
        $region26: #{tpu_custom_call.1} parent=11 // pred_check_branch
          %179 = sbr.rel (%p177) target = $region28
        $region27: #{tpu_custom_call.1} parent=11 // pred_region
          _
        $region28: #{tpu_custom_call.1} parent=11 // pred_fallthru
          _
      $region12: #{tpu_custom_call.1} parent=5 // pred_fallthru
        _
      %p180 = scmp.lt.s32.totalorder %s17, 2
      // Predicated region
      $region29: #{tpu_custom_call.1} parent=5 // pred_check
        %p181 = pneg %p180
      $region30: #{tpu_custom_call.1} parent=5 // pred_check_branch
        %183 = sbr.rel (%p181) target = $region32
      $region31: #{tpu_custom_call.1} parent=5 // pred_region
        // Predicated region
        $region33: #{tpu_custom_call.1} parent=31 // pred_check
          %p184 = pneg %p37
        $region34: #{tpu_custom_call.1} parent=31 // pred_check_branch
          %186 = sbr.rel (%p184) target = $region36
        $region35: #{tpu_custom_call.1} parent=31 // pred_region
          %s187 = sand.u32 %s27, 1
          %s188 = scalar_lea.sflag [#allocation3], %s187
          %s189 = sand.u32 %s27, 1
          %s190 = smul.addr %s189, 64
          %s191 = scalar_lea.vmem [#allocation2], %s190
          %193 = vsyncadd %s188, 0
          %s194 = smul.addr %s17, 8
          %s195 = smul.addr %s194, 8
          %s196 = scalar_lea.hbm %s0, %s195
          %s197 = sshll.u32 %s196, 4
          %s198 = int_to_ptr.hbm [resolvable:$true] %s197
          %s199 = sshll.u32 %s191, 4
          %s200 = int_to_ptr.vmem [resolvable:$true] %s199
          %205 = dma.hbm_to_vmem [thread:$0]  %s198, 1024, %s200, %s188, 256, 256, 16
        $region36: #{tpu_custom_call.1} parent=31 // pred_fallthru
          _
      $region32: #{tpu_custom_call.1} parent=5 // pred_fallthru
        _
      %p206 = scmp.le.s32.totalorder 1, %s17
      %p207 = scmp.lt.s32.totalorder %s17, 3
      %p208 = pnand %p206, %p207
      %p209 = pneg %p208
      // Predicated region
      $region37: #{tpu_custom_call.1} parent=5 // pred_check
        _
      $region38: #{tpu_custom_call.1} parent=5 // pred_check_branch
        %211 = sbr.rel (%p208) target = $region40
      $region39: #{tpu_custom_call.1} parent=5 // pred_region
        %s212 = ssub.s32 %s17, 1
        %s213 = sand.u32 %s30, 1
        %s214 = scalar_lea.sflag [#allocation3], %s213
        %s215 = sand.u32 %s30, 1
        %s216 = smul.addr %s215, 64
        %s217 = scalar_lea.vmem [#allocation2], %s216
        // Predicated region
        $region41: #{tpu_custom_call.1} parent=39 // pred_check
          %p218 = pneg %p43
        $region42: #{tpu_custom_call.1} parent=39 // pred_check_branch
          %220 = sbr.rel (%p218) target = $region44
        $region43: #{tpu_custom_call.1} parent=39 // pred_region
          %222 = dma.done %s214, 1024
        $region44: #{tpu_custom_call.1} parent=39 // pred_fallthru
          _
        %s223 = sand.u32 %s30, 1
        %s224 = scalar_lea.sflag [#allocation3], %s223
        %s225 = sand.u32 %s30, 1
        %s226 = smul.addr %s225, 64
        %s227 = scalar_lea.vmem [#allocation2], %s226
        %p228 = pneg %p43
        %p229 = pneg %p40
        %p230 = pneg %p64
        %p231 = pneg %p61
        %p232 = pneg %p85
        %p233 = pneg %p82
        %p234 = pneg %p106
        %p235 = pneg %p103
        %p236 = pneg %p127
        %p237 = pneg %p124
        %p238 = pneg %p153
        %p239 = pneg %p150
        %s240 = sand.u32 %s140, 1
        %s241 = scalar_lea.sflag [#allocation4], %s240
        %s242 = sand.u32 %s140, 1
        %s243 = smul.addr %s242, 64
        %s244 = scalar_lea.vmem [#allocation5], %s243
        %v245 = vld [vmem:[%s217] sm:$0xff]
        %v246 = vld [vmem:[%s217 + $0x8] sm:$0xff]
        %v247 = vld [vmem:[%s217 + $0x10] sm:$0xff]
        %v248 = vld [vmem:[%s217 + $0x18] sm:$0xff]
        %v249 = vld [vmem:[%s217 + $0x20] sm:$0xff]
        %v250 = vld [vmem:[%s217 + $0x28] sm:$0xff]
        %v251 = vld [vmem:[%s217 + $0x30] sm:$0xff]
        %v252 = vld [vmem:[%s217 + $0x38] sm:$0xff]
        %v253 = vadd.f32 %v245, %v246
        %254 = vadd.xlane.f32.xlu0 %v253
        %v255 = vpop.xlane.xlu0 %254
        %v256 = vadd.f32 %v247, %v248
        %257 = vadd.xlane.f32.xlu0 %v256
        %v258 = vpop.xlane.xlu0 %257
        %v259 = vadd.f32 %v249, %v250
        %260 = vadd.xlane.f32.xlu0 %v259
        %v261 = vpop.xlane.xlu0 %260
        %v262 = vadd.f32 %v251, %v252
        %263 = vadd.xlane.f32.xlu0 %v262
        %v264 = vpop.xlane.xlu0 %263
        %v265 = vmul.f32 %v255, 0.00390625
        %v266 = vmul.f32 %v258, 0.00390625
        %v267 = vmul.f32 %v261, 0.00390625
        %v268 = vmul.f32 %v264, 0.00390625
        %v269 = vld [vmem:[%s1] sm:$0xff]
        %v270 = vld [vmem:[%s1 + $0x8] sm:$0xff]
        %v271 = vld [vmem:[%s1 + $0x10] sm:$0xff]
        %v272 = vld [vmem:[%s1 + $0x18] sm:$0xff]
        %v273 = vld [vmem:[%s2] sm:$0x1]
        %v278 = vlaneseq
        %v279 = vand.u32 %v278, 127
        %v280 = vperm.slane %v265, %v279
        %v281 = vadd.s32 %v279, 4294967288
        %v282 = vperm.slane %v266, %v281
        %vm283 = vcmask 130112
        %v284 = vsel %vm283, %v282, %v280
        %v285 = vadd.s32 %v279, 4294967280
        %v286 = vperm.slane %v267, %v285
        %vm287 = vcmask 195712
        %v288 = vsel %vm287, %v286, %v284
        %v289 = vadd.s32 %v279, 4294967272
        %v290 = vperm.slane %v268, %v289
        %vm291 = vcmask 261312
        %v292 = vsel %vm291, %v290, %v288
        %vm293 = vcmask 261120
        %v294 = vsel %vm293, %v292, 0
        %296 = vmatpush.msra.mxu0 0.0
        %297 = vmatpush.msra.mxu0 0.0
        %298 = vmatpush.msra.mxu0 0.0
        %299 = vmatpush.msra.mxu0 0.0
        %300 = vmatpush.msra.mxu0 0.0
        %301 = vmatpush.msra.mxu0 0.0
        %302 = vmatpush.msra.mxu0 0.0
        %303 = vmatpush.msra.mxu0 0.0
        %304 = vmatpush.msra.mxu0 0.0
        %305 = vmatpush.msra.mxu0 0.0
        %306 = vmatpush.msra.mxu0 0.0
        %307 = vmatpush.msra.mxu0 0.0
        %308 = vmatpush.msra.mxu0 %v272
        %309 = vmatpush.msra.mxu0 %v271
        %310 = vmatpush.msra.mxu0 %v270
        %311 = vmatpush.msra.mxu0 %v269
        %312 = vmatmul.f32.gmra.mxu0 %v294
        %v313 = vpop.f32.mrf.mxu0
        %v314 = vadd.f32 %v273, %v313
        %315 = vdwg.mxu0
        %v316 = vmax.f32 %v314, 0.0
        %v317 = vld [vmem:[%s3] sm:$0x3]
        %v318 = vld [vmem:[%s4] sm:$0x1]
        %vm319 = vcmask 15360
        %v321 = vsel %vm319, %v316, 0
        %vm323 = vcmask 1041408
        %v325 = vsel %vm323, %v317, 0
        %327 = vmatpush.msra.mxu0 0.0
        %328 = vmatpush.msra.mxu0 0.0
        %329 = vmatpush.msra.mxu0 0.0
        %330 = vmatpush.msra.mxu0 0.0
        %331 = vmatpush.msra.mxu0 0.0
        %332 = vmatpush.msra.mxu0 0.0
        %333 = vmatpush.msra.mxu0 0.0
        %334 = vmatpush.msra.mxu0 0.0
        %335 = vmatpush.msra.mxu0 0.0
        %336 = vmatpush.msra.mxu0 0.0
        %337 = vmatpush.msra.mxu0 0.0
        %338 = vmatpush.msra.mxu0 0.0
        %339 = vmatpush.msra.mxu0 0.0
        %340 = vmatpush.msra.mxu0 0.0
        %341 = vmatpush.msra.mxu0 0.0
        %342 = vmatpush.msra.mxu0 %v325
        %343 = vmatmul.f32.gmra.mxu0 %v321
        %v344 = vpop.f32.mrf.mxu0
        %v345 = vadd.f32 %v318, %v344
        %346 = vdwg.mxu0
        %v347 = vmax.f32 %v345, 0.0
        %v348 = vxor.u32 %v347, 2147483648
        %v349 = vmul.f32 %v348, 1.442695
        %v350 = vpow.pop %v349
        %v351 = vadd.f32 %v350, 1.0
        %v352 = vrcp.pop %v351
        %v353 = vmul.f32 %v351, %v352
        %v354 = vsub.f32 1.0, %v353
        %v355 = vmul.f32 %v352, %v354
        %v356 = vadd.f32 %v352, %v355
        %vm357 = vweird.f32 %v351
        %vm358 = vweird.f32 %v352
        %vm359 = vmor %vm357, %vm358
        %v360 = vsel %vm359, %v352, %v356
        %v361 = vand.u32 2147483647, %v351
        %vm362 = vcmp.eq.f32.partialorder %v361, 8.507059e+37
        %v363 = vand.u32 %v351, 2147483648
        %v364 = vor.u32 1.1754944e-38, %v363
        %v365 = vsel %vm362, %v364, %v360
        %v366 = vmul.f32 1.0, %v365
        %v367 = vperm.slane %v366, 0
        %v368 = vlaneseq
        %v369 = vshrl.u32 %v368, 7
        %371 = vset.pattern.permute.xlu0 %v369
        %372 = vperm.xlu0 %371, %v367
        %v373 = vpop.permute.xlu0 %372
        %v374 = vlaneseq
        %v375 = vshrl.u32 %v374, 7
        %v376 = vadd.s32 %v375, 8
        %377 = vset.pattern.permute.xlu0 %v376
        %378 = vperm.xlu0 %377, %v367
        %v379 = vpop.permute.xlu0 %378
        %v380 = vlaneseq
        %v381 = vshrl.u32 %v380, 7
        %v382 = vadd.s32 %v381, 16
        %383 = vset.pattern.permute.xlu0 %v382
        %384 = vperm.xlu0 %383, %v367
        %v385 = vpop.permute.xlu0 %384
        %v386 = vlaneseq
        %v387 = vshrl.u32 %v386, 7
        %v388 = vadd.s32 %v387, 24
        %389 = vset.pattern.permute.xlu0 %v388
        %390 = vperm.xlu0 %389, %v367
        %v391 = vpop.permute.xlu0 %390
        %v392 = vmul.f32 %v245, %v373
        %v393 = vmul.f32 %v246, %v373
        %v394 = vmul.f32 %v247, %v379
        %v395 = vmul.f32 %v248, %v379
        %v396 = vmul.f32 %v249, %v385
        %v397 = vmul.f32 %v250, %v385
        %v398 = vmul.f32 %v251, %v391
        %v399 = vmul.f32 %v252, %v391
        %400 = vst [vmem:[%s244] sm:$0xff] %v392
        %401 = vst [vmem:[%s244 + $0x8] sm:$0xff] %v393
        %402 = vst [vmem:[%s244 + $0x10] sm:$0xff] %v394
        %403 = vst [vmem:[%s244 + $0x18] sm:$0xff] %v395
        %404 = vst [vmem:[%s244 + $0x20] sm:$0xff] %v396
        %405 = vst [vmem:[%s244 + $0x28] sm:$0xff] %v397
        %406 = vst [vmem:[%s244 + $0x30] sm:$0xff] %v398
        %407 = vst [vmem:[%s244 + $0x38] sm:$0xff] %v399
        %s408 = sand.u32 %s140, 1
        %s409 = scalar_lea.sflag [#allocation4], %s408
        %s410 = sand.u32 %s140, 1
        %s411 = smul.addr %s410, 64
        %s412 = scalar_lea.vmem [#allocation5], %s411
        // Predicated region
        $region45: #{tpu_custom_call.1} parent=39 // pred_check
          %p413 = pneg %p150
        $region46: #{tpu_custom_call.1} parent=39 // pred_check_branch
          %415 = sbr.rel (%p413) target = $region48
        $region47: #{tpu_custom_call.1} parent=39 // pred_region
          %417 = vsyncadd %s409, 0
          %s418 = smul.addr %s22, 8
          %s419 = smul.addr %s418, 8
          %s420 = scalar_lea.hbm %s5, %s419
          %s421 = sshll.u32 %s412, 4
          %s422 = int_to_ptr.vmem [resolvable:$true] %s421
          %s423 = sshll.u32 %s420, 4
          %s424 = int_to_ptr.hbm [resolvable:$true] %s423
          %429 = dma.vmem_to_hbm [thread:$0]  %s422, 1024, %s424, %s409, 256, 256, 16
        $region48: #{tpu_custom_call.1} parent=39 // pred_fallthru
          _
      $region40: #{tpu_custom_call.1} parent=5 // pred_fallthru
        _
      %p430 = scmp.le.s32.totalorder 2, %s17
      // Predicated region
      $region49: #{tpu_custom_call.1} parent=5 // pred_check
        %p431 = pneg %p430
      $region50: #{tpu_custom_call.1} parent=5 // pred_check_branch
        %433 = sbr.rel (%p431) target = $region52
      $region51: #{tpu_custom_call.1} parent=5 // pred_region
        %s434 = ssub.s32 %s17, 2
        // Predicated region
        $region53: #{tpu_custom_call.1} parent=51 // pred_check
          %p435 = pneg %p156
        $region54: #{tpu_custom_call.1} parent=51 // pred_check_branch
          %437 = sbr.rel (%p435) target = $region56
        $region55: #{tpu_custom_call.1} parent=51 // pred_region
          %s438 = sand.u32 %s141, 1
          %s439 = scalar_lea.sflag [#allocation4], %s438
          %s440 = sand.u32 %s141, 1
          %s441 = smul.addr %s440, 64
          %s442 = scalar_lea.vmem [#allocation5], %s441
          %444 = dma.done %s439, 1024
        $region56: #{tpu_custom_call.1} parent=51 // pred_fallthru
          _
      $region52: #{tpu_custom_call.1} parent=5 // pred_fallthru
        _
    $region6: #{tpu_custom_call.1} parent=1 // loop_footer
      %s21 = sadd.s32 1, %s17
    $region7: #{tpu_custom_call.1} parent=1 // loop_footer_branch
      %16 = sbr.rel target = $region3
    $region8: #{tpu_custom_call.1} parent=1 // loop_exit
      _
    %445 = vsyncpa [#allocation3], 1
    %s446 = scalar_lea.sflag [#allocation3], 1
    %447 = vsyncpa %s446, 1
    %448 = vsyncpa [#allocation4], 1
    %s449 = scalar_lea.sflag [#allocation4], 1
    %450 = vsyncpa %s449, 1

</llo_original>
